<compile_context>
chip_gen: v7x
topology: tpu7x:2x2x1
jax: 0.10.0
libtpu: 0.0.40
codegen_flags: <defaults>
</compile_context>

<pallas_src>
import functools

import jax
import jax.numpy as jnp
from jax.experimental import pallas as pl
from jax.experimental.pallas import tpu as pltpu

LANE = 128      # TPU lane width (last dim of every vreg)
SUBLANE = 8     # sublane granularity (second-to-last dim)
N_LAYERS = 4


def _round_up(x, m):
    return ((x + m - 1) // m) * m


def _dnn_kernel(x_ref, w_ref, b_ref, o_ref, *, in_dim, out_dim):
    # x_ref: (TB, in_dim)   w_ref: (4, 128, 128)   b_ref: (4, 1, 128)
    # o_ref: (TB, out_dim)
    x = x_ref[...]
    # Layer 1: only the first in_dim rows of the padded weight slab are real.
    w0 = w_ref[0][:in_dim, :]
    h = jnp.maximum(
        jnp.dot(x, w0, preferred_element_type=jnp.float32) + b_ref[0], 0.0)
    h = jnp.maximum(
        jnp.dot(h, w_ref[1], preferred_element_type=jnp.float32) + b_ref[1], 0.0)
    h = jnp.maximum(
        jnp.dot(h, w_ref[2], preferred_element_type=jnp.float32) + b_ref[2], 0.0)
    y = jnp.dot(h, w_ref[3], preferred_element_type=jnp.float32) + b_ref[3]
    # Store only the true action_space lanes (narrow rows are contiguous in HBM).
    o_ref[...] = y[:, :out_dim].astype(o_ref.dtype)


def pack_params(params):
    """Pack (W1,b1,...,W4,b4) into zero-padded slabs:
         w_slab: f32[4, 128, 128]  (rows = in_features, lanes = out_features)
         b_slab: f32[4, 1, 128]
       Zero padding keeps the math exact: padded weight rows / bias lanes
       contribute 0, so padded output lanes stay 0 through every ReLU."""
    ws, bs = params[0::2], params[1::2]
    w_slab = jnp.zeros((N_LAYERS, LANE, LANE), jnp.float32)
    b_slab = jnp.zeros((N_LAYERS, 1, LANE), jnp.float32)
    for l, (w, b) in enumerate(zip(ws, bs)):
        fi, fo = w.shape
        assert fi <= LANE and fo <= LANE, "layer dims must fit one 128-lane tile"
        w_slab = w_slab.at[l, :fi, :fo].set(w.astype(jnp.float32))
        b_slab = b_slab.at[l, :, :fo].set(b.reshape(1, fo).astype(jnp.float32))
    return w_slab, b_slab


@functools.partial(jax.jit, static_argnames=("out_dim", "tile_b"))
def _dnn_forward(x, w_slab, b_slab, *, out_dim, tile_b):
    B, in_dim = x.shape
    x = x.astype(jnp.float32)

    # Batch tile: multiple of 8 sublanes; capped at tile_b; shrunk so that the
    # "parallel" batch axis gets >= 2 grid steps (both v7x TensorCores busy).
    tb = min(tile_b, max(SUBLANE, _round_up((B + 1) // 2, SUBLANE)))

    # Pad the batch only to a sublane multiple; Pallas masks the ragged last
    # grid block (rows are independent -> garbage tail rows are never written).
    b_pad = _round_up(B, SUBLANE)
    if b_pad != B:
        x = jnp.pad(x, ((0, b_pad - B), (0, 0)))

    grid = (pl.cdiv(b_pad, tb),)
    out = pl.pallas_call(
        functools.partial(_dnn_kernel, in_dim=in_dim, out_dim=out_dim),
        out_shape=jax.ShapeDtypeStruct((b_pad, out_dim), jnp.float32),
        grid=grid,
        in_specs=[
            # activation stream at true width, tiled over batch, auto-pipelined
            pl.BlockSpec((tb, in_dim), lambda i: (i, 0)),
            # packed weights / biases: constant index -> VMEM-resident
            pl.BlockSpec((N_LAYERS, LANE, LANE), lambda i: (0, 0, 0)),
            pl.BlockSpec((N_LAYERS, 1, LANE), lambda i: (0, 0, 0)),
        ],
        out_specs=pl.BlockSpec((tb, out_dim), lambda i: (i, 0)),
        compiler_params=pltpu.CompilerParams(
            dimension_semantics=("parallel",),      # megacore sharding on v7x
            vmem_limit_bytes=32 * 1024 * 1024,      # far above actual need, safe on v7x
        ),
    )(x, w_slab, b_slab)
    return out[:B]


def make_dnn_forward(params, *, tile_b=1024):
    """Pack parameters ONCE and return a jitted forward fn: (B, state) -> (B, action)."""
    w_slab, b_slab = pack_params(params)
    out_dim = int(params[6].shape[1])

    def forward(x):
        return _dnn_forward(x, w_slab, b_slab, out_dim=out_dim, tile_b=tile_b)

    return forward


def init_params(key, state_space_size, action_space_size):
    """Deterministic init mimicking torch.nn.Linear (uniform +/- 1/sqrt(fan_in)).
    Weights stored as (in_features, out_features)."""
    dims = [(state_space_size, 20), (20, 15), (15, 10), (10, action_space_size)]
    params = []
    for fan_in, fan_out in dims:
        key, kw, kb = jax.random.split(key, 3)
        bound = 1.0 / jnp.sqrt(fan_in)
        w = jax.random.uniform(kw, (fan_in, fan_out), jnp.float32, -bound, bound)
        b = jax.random.uniform(kb, (1, fan_out), jnp.float32, -bound, bound)
        params += [w, b]
    return params


def dnn_reference(x, params):
    w1, b1, w2, b2, w3, b3, w4, b4 = params
    h = jnp.maximum(x @ w1 + b1, 0.0)
    h = jnp.maximum(h @ w2 + b2, 0.0)
    h = jnp.maximum(h @ w3 + b3, 0.0)
    return h @ w4 + b4


if __name__ == "__main__":
    state_space_size = 8
    action_space_size = 4
    batch = 2

    key = jax.random.PRNGKey(0)
    key, kx = jax.random.split(key)
    x = jax.random.normal(kx, (batch, state_space_size), jnp.float32)

    params = init_params(key, state_space_size, action_space_size)
    forward = make_dnn_forward(params)

    out = jax.block_until_ready(forward(x))
    ref = dnn_reference(x, params)
    assert out.shape == (batch, action_space_size)
    assert jnp.allclose(out, ref, atol=1e-4, rtol=1e-4), "mismatch vs reference"

    # Larger batch exercising the multi-step grid + ragged last block path.
    key, kx2 = jax.random.split(key)
    x_big = jax.random.normal(kx2, (1030, state_space_size), jnp.float32)
    out_big = jax.block_until_ready(forward(x_big))
    ref_big = dnn_reference(x_big, params)
    assert out_big.shape == (1030, action_space_size)
    assert jnp.allclose(out_big, ref_big, atol=1e-4, rtol=1e-4), "big-batch mismatch"

    print("KERNEL_OK")
</pallas_src>

<mosaic_0001>
module attributes {stable_mosaic.version = 11 : i64} {
  func.func @_dnn_kernel(%arg0: i32, %arg1: memref<8x8xf32, #tpu.memory_space<vmem>>, %arg2: memref<4x128x128xf32, #tpu.memory_space<vmem>>, %arg3: memref<4x1x128xf32, #tpu.memory_space<vmem>>, %arg4: memref<8x4xf32, #tpu.memory_space<vmem>>) attributes {dimension_semantics = [#tpu.dimension_semantics<parallel>], iteration_bounds = array<i64: 1>, scalar_prefetch = 0 : i64, scratch_operands = 0 : i64, tpu.core_type = #tpu.core_type<tc>, window_params = [{transform_indices = @transform_0, window_bounds = array<i64: 8, 8>}, {pipeline_mode = #tpu.pipeline_mode<synchronous>, transform_indices = @transform_1, window_bounds = array<i64: 4, 128, 128>}, {pipeline_mode = #tpu.pipeline_mode<synchronous>, transform_indices = @transform_2, window_bounds = array<i64: 4, 1, 128>}, {transform_indices = @transform_3, window_bounds = array<i64: 8, 4>}]} {
    %c0 = arith.constant 0 : index
    %c0_0 = arith.constant 0 : index
    %0 = vector.load %arg1[%c0, %c0_0] : memref<8x8xf32, #tpu.memory_space<vmem>>, vector<8x8xf32>
    %c0_1 = arith.constant 0 : index
    %c0_2 = arith.constant 0 : index
    %c0_3 = arith.constant 0 : index
    %1 = vector.load %arg2[%c0_1, %c0_2, %c0_3] : memref<4x128x128xf32, #tpu.memory_space<vmem>>, vector<1x128x128xf32>
    %2 = vector.shape_cast %1 : vector<1x128x128xf32> to vector<128x128xf32>
    %3 = vector.extract_strided_slice %2 {offsets = [0, 0], sizes = [8, 128], strides = [1, 1]} : vector<128x128xf32> to vector<8x128xf32>
    %cst = arith.constant dense<0.000000e+00> : vector<8x128xf32>
    %4 = tpu.matmul %0, %3, %cst {dimension_numbers = #tpu.dot_dimension_numbers<[1], [0], [0], [1], [0, 0, 1, 1], [], []>} : vector<8x8xf32>, vector<8x128xf32>, vector<8x128xf32> -> vector<8x128xf32>
    %c0_4 = arith.constant 0 : index
    %c0_5 = arith.constant 0 : index
    %c0_6 = arith.constant 0 : index
    %5 = vector.load %arg3[%c0_4, %c0_5, %c0_6] : memref<4x1x128xf32, #tpu.memory_space<vmem>>, vector<1x1x128xf32>
    %6 = vector.shape_cast %5 : vector<1x1x128xf32> to vector<1x128xf32>
    %7 = vector.broadcast %6 : vector<1x128xf32> to vector<8x128xf32>
    %8 = arith.addf %4, %7 : vector<8x128xf32>
    %cst_7 = arith.constant 0.000000e+00 : f32
    %9 = vector.broadcast %cst_7 : f32 to vector<8x128xf32>
    %10 = arith.maximumf %8, %9 : vector<8x128xf32>
    %c1 = arith.constant 1 : index
    %c0_8 = arith.constant 0 : index
    %c0_9 = arith.constant 0 : index
    %11 = vector.load %arg2[%c1, %c0_8, %c0_9] : memref<4x128x128xf32, #tpu.memory_space<vmem>>, vector<1x128x128xf32>
    %12 = vector.shape_cast %11 : vector<1x128x128xf32> to vector<128x128xf32>
    %cst_10 = arith.constant dense<0.000000e+00> : vector<8x128xf32>
    %13 = tpu.matmul %10, %12, %cst_10 {dimension_numbers = #tpu.dot_dimension_numbers<[1], [0], [0], [1], [0, 0, 1, 1], [], []>} : vector<8x128xf32>, vector<128x128xf32>, vector<8x128xf32> -> vector<8x128xf32>
    %c1_11 = arith.constant 1 : index
    %c0_12 = arith.constant 0 : index
    %c0_13 = arith.constant 0 : index
    %14 = vector.load %arg3[%c1_11, %c0_12, %c0_13] : memref<4x1x128xf32, #tpu.memory_space<vmem>>, vector<1x1x128xf32>
    %15 = vector.shape_cast %14 : vector<1x1x128xf32> to vector<1x128xf32>
    %16 = vector.broadcast %15 : vector<1x128xf32> to vector<8x128xf32>
    %17 = arith.addf %13, %16 : vector<8x128xf32>
    %cst_14 = arith.constant 0.000000e+00 : f32
    %18 = vector.broadcast %cst_14 : f32 to vector<8x128xf32>
    %19 = arith.maximumf %17, %18 : vector<8x128xf32>
    %c2 = arith.constant 2 : index
    %c0_15 = arith.constant 0 : index
    %c0_16 = arith.constant 0 : index
    %20 = vector.load %arg2[%c2, %c0_15, %c0_16] : memref<4x128x128xf32, #tpu.memory_space<vmem>>, vector<1x128x128xf32>
    %21 = vector.shape_cast %20 : vector<1x128x128xf32> to vector<128x128xf32>
    %cst_17 = arith.constant dense<0.000000e+00> : vector<8x128xf32>
    %22 = tpu.matmul %19, %21, %cst_17 {dimension_numbers = #tpu.dot_dimension_numbers<[1], [0], [0], [1], [0, 0, 1, 1], [], []>} : vector<8x128xf32>, vector<128x128xf32>, vector<8x128xf32> -> vector<8x128xf32>
    %c2_18 = arith.constant 2 : index
    %c0_19 = arith.constant 0 : index
    %c0_20 = arith.constant 0 : index
    %23 = vector.load %arg3[%c2_18, %c0_19, %c0_20] : memref<4x1x128xf32, #tpu.memory_space<vmem>>, vector<1x1x128xf32>
    %24 = vector.shape_cast %23 : vector<1x1x128xf32> to vector<1x128xf32>
    %25 = vector.broadcast %24 : vector<1x128xf32> to vector<8x128xf32>
    %26 = arith.addf %22, %25 : vector<8x128xf32>
    %cst_21 = arith.constant 0.000000e+00 : f32
    %27 = vector.broadcast %cst_21 : f32 to vector<8x128xf32>
    %28 = arith.maximumf %26, %27 : vector<8x128xf32>
    %c3 = arith.constant 3 : index
    %c0_22 = arith.constant 0 : index
    %c0_23 = arith.constant 0 : index
    %29 = vector.load %arg2[%c3, %c0_22, %c0_23] : memref<4x128x128xf32, #tpu.memory_space<vmem>>, vector<1x128x128xf32>
    %30 = vector.shape_cast %29 : vector<1x128x128xf32> to vector<128x128xf32>
    %cst_24 = arith.constant dense<0.000000e+00> : vector<8x128xf32>
    %31 = tpu.matmul %28, %30, %cst_24 {dimension_numbers = #tpu.dot_dimension_numbers<[1], [0], [0], [1], [0, 0, 1, 1], [], []>} : vector<8x128xf32>, vector<128x128xf32>, vector<8x128xf32> -> vector<8x128xf32>
    %c3_25 = arith.constant 3 : index
    %c0_26 = arith.constant 0 : index
    %c0_27 = arith.constant 0 : index
    %32 = vector.load %arg3[%c3_25, %c0_26, %c0_27] : memref<4x1x128xf32, #tpu.memory_space<vmem>>, vector<1x1x128xf32>
    %33 = vector.shape_cast %32 : vector<1x1x128xf32> to vector<1x128xf32>
    %34 = vector.broadcast %33 : vector<1x128xf32> to vector<8x128xf32>
    %35 = arith.addf %31, %34 : vector<8x128xf32>
    %36 = vector.extract_strided_slice %35 {offsets = [0, 0], sizes = [8, 4], strides = [1, 1]} : vector<8x128xf32> to vector<8x4xf32>
    %c0_28 = arith.constant 0 : index
    %c0_29 = arith.constant 0 : index
    %37 = vector.load %arg4[%c0_28, %c0_29] : memref<8x4xf32, #tpu.memory_space<vmem>>, vector<8x4xf32>
    tpu.vector_store %arg4[%c0_28, %c0_29], %36 {strides = array<i32>} : memref<8x4xf32, #tpu.memory_space<vmem>>, vector<8x4xf32>,
    return
  }
  func.func @transform_0(%arg0: i32) -> (i32, i32) {
    %c0_i32 = arith.constant 0 : i32
    %c0_i32_0 = arith.constant 0 : i32
    return %arg0, %c0_i32 : i32, i32
  }
  func.func @transform_1(%arg0: i32) -> (i32, i32, i32) {
    %c0_i32 = arith.constant 0 : i32
    %c0_i32_0 = arith.constant 0 : i32
    %c0_i32_1 = arith.constant 0 : i32
    %c0_i32_2 = arith.constant 0 : i32
    return %c0_i32, %c0_i32_0, %c0_i32_1 : i32, i32, i32
  }
  func.func @transform_2(%arg0: i32) -> (i32, i32, i32) {
    %c0_i32 = arith.constant 0 : i32
    %c0_i32_0 = arith.constant 0 : i32
    %c0_i32_1 = arith.constant 0 : i32
    %c0_i32_2 = arith.constant 0 : i32
    return %c0_i32, %c0_i32_0, %c0_i32_1 : i32, i32, i32
  }
  func.func @transform_3(%arg0: i32) -> (i32, i32) {
    %c0_i32 = arith.constant 0 : i32
    %c0_i32_0 = arith.constant 0 : i32
    return %arg0, %c0_i32 : i32, i32
  }
}

</mosaic_0001>

<llo_original>
// kernel: _dnn_forward.1
$region0: #{_dnn_forward.1}
  #allocation0 [shape = 'u32[]', space=smem, size = 0x4, offset = 0x4, fixed_abs, tag = 'smem constant byte address 0x4 - core index']
  #allocation1 [shape = 'u32[144,128]{1,0:T(1,128)}', space=vmem, size = 0x12000, scoped, tag = 'internal scratch']
  %s0 = inlined_call_operand.vmem [shape: f32[8,8], index: 0, kind: input, shape index: {}]
  %s1 = inlined_call_operand.hbm [shape: f32[4,128,128], index: 1, kind: input, shape index: {}]
  %s2 = inlined_call_operand.vmem [shape: f32[4,1,128], index: 2, kind: input, shape index: {}]
  %s3 = inlined_call_operand.vmem [shape: f32[8,4], index: 3, kind: output, shape index: {}]
  %s4 = sld [smem:[#allocation0]]
  $region26: #{_dnn_forward.1} parent=0
    _
  %s6 = ssub.s32 1, %s4
  %s7 = scalar_select 0, %s6, %s4
  $region1: #{_dnn_forward.1} parent=0
    #allocation2 [shape = 'u8[262144]{0}', space=vmem, size = 0x40000, scoped, tag = 'input window, operand 1, single buffered']
    #allocation3 [shape = 's32[1]{0}', space=sflag, size = 0x4, scoped, tag = 'scoped memory for _dnn_forward.1']
    %8 = vsyncpa [#allocation3], 0
    // Predicated region
    $region2: #{_dnn_forward.1} parent=1 // pred_check
      _
    $region3: #{_dnn_forward.1} parent=1 // pred_check_branch
      %10 = sbr.rel (0) target = $region5
    $region4: #{_dnn_forward.1} parent=1 // pred_region
      _
    $region5: #{_dnn_forward.1} parent=1 // pred_fallthru
      _
    // Predicated region
    $region6: #{_dnn_forward.1} parent=1 // pred_check
      _
    $region7: #{_dnn_forward.1} parent=1 // pred_check_branch
      %12 = sbr.rel (0) target = $region9
    $region8: #{_dnn_forward.1} parent=1 // pred_region
      %s14 = ssub.s32 8192, 8192
      %15 = vsyncadd [#allocation3], %s14
      %s16 = sshll.u32 [#allocation2], 4
      %s17 = int_to_ptr.vmem [resolvable:$true] %s16
      %22 = dma.hbm_to_vmem [thread:$0]  %s1, 8192, %s17, [#allocation3], 128, 128, 8
    $region9: #{_dnn_forward.1} parent=1 // pred_fallthru
      _
    // Predicated region
    $region10: #{_dnn_forward.1} parent=1 // pred_check
      _
    $region11: #{_dnn_forward.1} parent=1 // pred_check_branch
      %24 = sbr.rel (0) target = $region13
    $region12: #{_dnn_forward.1} parent=1 // pred_region
      _
    $region13: #{_dnn_forward.1} parent=1 // pred_fallthru
      _
    // Predicated region
    $region14: #{_dnn_forward.1} parent=1 // pred_check
      _
    $region15: #{_dnn_forward.1} parent=1 // pred_check_branch
      %26 = sbr.rel (0) target = $region17
    $region16: #{_dnn_forward.1} parent=1 // pred_region
      %27 = dma.done [#allocation3], 8192
    $region17: #{_dnn_forward.1} parent=1 // pred_fallthru
      _
    %v28 = vld [vmem:[%s0] sm:$0xff]
    %v29 = vld [vmem:[#allocation2] sm:$0xff]
    %v30 = vld [vmem:[%s2] sm:$0x1]
    %v32 = vlaneseq
    %v33 = vshrl.u32 %v32, 7
    %v34 = vsub.s32 0, %v33
    %v35 = vrot.slane %v30, %v34
    %vm37 = vcmask 64512
    %v39 = vsel %vm37, %v28, 0
    %41 = vmatprep.subr.mxu0 0.0
    %42 = vmatpush1.msra.mxu0 %v29
    %43 = vmatprep.subr.mxu0 0.0
    %44 = vmatpush1.msra.mxu0 0.0
    %45 = vmatprep.subr.mxu0 0.0
    %46 = vmatpush1.msra.mxu0 0.0
    %47 = vmatprep.subr.mxu0 0.0
    %48 = vmatpush1.msra.mxu0 0.0
    %49 = vmatprep.subr.mxu0 0.0
    %50 = vmatpush1.msra.mxu0 0.0
    %51 = vmatprep.subr.mxu0 0.0
    %52 = vmatpush1.msra.mxu0 0.0
    %53 = vmatprep.subr.mxu0 0.0
    %54 = vmatpush1.msra.mxu0 0.0
    %55 = vmatprep.subr.mxu0 0.0
    %56 = vmatpush1.msra.mxu0 0.0
    %57 = vmatprep.subr.mxu0 0.0
    %58 = vmatpush1.msra.mxu0 0.0
    %59 = vmatprep.subr.mxu0 0.0
    %60 = vmatpush1.msra.mxu0 0.0
    %61 = vmatprep.subr.mxu0 0.0
    %62 = vmatpush1.msra.mxu0 0.0
    %63 = vmatprep.subr.mxu0 0.0
    %64 = vmatpush1.msra.mxu0 0.0
    %65 = vmatprep.subr.mxu0 0.0
    %66 = vmatpush1.msra.mxu0 0.0
    %67 = vmatprep.subr.mxu0 0.0
    %68 = vmatpush1.msra.mxu0 0.0
    %69 = vmatprep.subr.mxu0 0.0
    %70 = vmatpush1.msra.mxu0 0.0
    %71 = vmatprep.subr.mxu0 0.0
    %72 = vmatpush1.msra.mxu0 0.0
    %73 = vmatprep.subr.mxu0 0.0
    %74 = vmatpush1.msra.mxu0 0.0
    %75 = vmatprep.subr.mxu0 0.0
    %76 = vmatpush1.msra.mxu0 0.0
    %77 = vmatprep.subr.mxu0 0.0
    %78 = vmatpush1.msra.mxu0 0.0
    %79 = vmatprep.subr.mxu0 0.0
    %80 = vmatpush1.msra.mxu0 0.0
    %81 = vmatprep.subr.mxu0 0.0
    %82 = vmatpush1.msra.mxu0 0.0
    %83 = vmatprep.subr.mxu0 0.0
    %84 = vmatpush1.msra.mxu0 0.0
    %85 = vmatprep.subr.mxu0 0.0
    %86 = vmatpush1.msra.mxu0 0.0
    %87 = vmatprep.subr.mxu0 0.0
    %88 = vmatpush1.msra.mxu0 0.0
    %89 = vmatprep.subr.mxu0 0.0
    %90 = vmatpush1.msra.mxu0 0.0
    %91 = vmatprep.subr.mxu0 0.0
    %92 = vmatpush1.msra.mxu0 0.0
    %93 = vmatprep.subr.mxu0 0.0
    %94 = vmatpush1.msra.mxu0 0.0
    %95 = vmatprep.subr.mxu0 0.0
    %96 = vmatpush1.msra.mxu0 0.0
    %97 = vmatprep.subr.mxu0 0.0
    %98 = vmatpush1.msra.mxu0 0.0
    %99 = vmatprep.subr.mxu0 0.0
    %100 = vmatpush1.msra.mxu0 0.0
    %101 = vmatprep.subr.mxu0 0.0
    %102 = vmatpush1.msra.mxu0 0.0
    %103 = vmatprep.subr.mxu0 0.0
    %104 = vmatpush1.msra.mxu0 0.0
    %105 = vmatprep.mubr.f32.mxu0 0.0
    %106 = vmatmul.mubr.f32.gmra.mrb[0].mxu0 %v39
    %v107 = vpop.f32.mrb[0].mxu0
    %v108 = vadd.f32 %v35, %v107
    %v109 = vpop.f32.mrb[0].mxu0
    %110 = vdwg.mxu0
    %v111 = vmax.f32 %v108, 0.0
    %s112 = scalar_lea.vmem [#allocation2], 128
    %v113 = vld [vmem:[%s112] sm:$0xff]
    %v114 = vld [vmem:[%s112 + $0x8] sm:$0xff]
    %v115 = vld [vmem:[%s112 + $0x10] sm:$0xff]
    %v116 = vld [vmem:[%s112 + $0x18] sm:$0xff]
    %v117 = vld [vmem:[%s112 + $0x20] sm:$0xff]
    %v118 = vld [vmem:[%s112 + $0x28] sm:$0xff]
    %v119 = vld [vmem:[%s112 + $0x30] sm:$0xff]
    %v120 = vld [vmem:[%s112 + $0x38] sm:$0xff]
    %v121 = vld [vmem:[%s112 + $0x40] sm:$0xff]
    %v122 = vld [vmem:[%s112 + $0x48] sm:$0xff]
    %v123 = vld [vmem:[%s112 + $0x50] sm:$0xff]
    %v124 = vld [vmem:[%s112 + $0x58] sm:$0xff]
    %v125 = vld [vmem:[%s112 + $0x60] sm:$0xff]
    %v126 = vld [vmem:[%s112 + $0x68] sm:$0xff]
    %v127 = vld [vmem:[%s112 + $0x70] sm:$0xff]
    %v128 = vld [vmem:[%s112 + $0x78] sm:$0xff]
    %s129 = scalar_lea.vmem %s2, 1
    %v130 = vld [vmem:[%s129] sm:$0x1]
    %v132 = vlaneseq
    %v133 = vshrl.u32 %v132, 7
    %v134 = vsub.s32 0, %v133
    %v135 = vrot.slane %v130, %v134
    %137 = vmatprep.subr.mxu0 0.0
    %138 = vmatpush1.msra.mxu0 %v113
    %139 = vmatprep.subr.mxu0 0.0
    %140 = vmatpush1.msra.mxu0 %v114
    %141 = vmatprep.subr.mxu0 0.0
    %142 = vmatpush1.msra.mxu0 %v115
    %143 = vmatprep.subr.mxu0 0.0
    %144 = vmatpush1.msra.mxu0 %v116
    %145 = vmatprep.subr.mxu0 0.0
    %146 = vmatpush1.msra.mxu0 %v117
    %147 = vmatprep.subr.mxu0 0.0
    %148 = vmatpush1.msra.mxu0 %v118
    %149 = vmatprep.subr.mxu0 0.0
    %150 = vmatpush1.msra.mxu0 %v119
    %151 = vmatprep.subr.mxu0 0.0
    %152 = vmatpush1.msra.mxu0 %v120
    %153 = vmatprep.subr.mxu0 0.0
    %154 = vmatpush1.msra.mxu0 %v121
    %155 = vmatprep.subr.mxu0 0.0
    %156 = vmatpush1.msra.mxu0 %v122
    %157 = vmatprep.subr.mxu0 0.0
    %158 = vmatpush1.msra.mxu0 %v123
    %159 = vmatprep.subr.mxu0 0.0
    %160 = vmatpush1.msra.mxu0 %v124
    %161 = vmatprep.subr.mxu0 0.0
    %162 = vmatpush1.msra.mxu0 %v125
    %163 = vmatprep.subr.mxu0 0.0
    %164 = vmatpush1.msra.mxu0 %v126
    %165 = vmatprep.subr.mxu0 0.0
    %166 = vmatpush1.msra.mxu0 %v127
    %167 = vmatprep.subr.mxu0 0.0
    %168 = vmatpush1.msra.mxu0 %v128
    %169 = vmatprep.subr.mxu0 0.0
    %170 = vmatpush1.msra.mxu0 0.0
    %171 = vmatprep.subr.mxu0 0.0
    %172 = vmatpush1.msra.mxu0 0.0
    %173 = vmatprep.subr.mxu0 0.0
    %174 = vmatpush1.msra.mxu0 0.0
    %175 = vmatprep.subr.mxu0 0.0
    %176 = vmatpush1.msra.mxu0 0.0
    %177 = vmatprep.subr.mxu0 0.0
    %178 = vmatpush1.msra.mxu0 0.0
    %179 = vmatprep.subr.mxu0 0.0
    %180 = vmatpush1.msra.mxu0 0.0
    %181 = vmatprep.subr.mxu0 0.0
    %182 = vmatpush1.msra.mxu0 0.0
    %183 = vmatprep.subr.mxu0 0.0
    %184 = vmatpush1.msra.mxu0 0.0
    %185 = vmatprep.subr.mxu0 0.0
    %186 = vmatpush1.msra.mxu0 0.0
    %187 = vmatprep.subr.mxu0 0.0
    %188 = vmatpush1.msra.mxu0 0.0
    %189 = vmatprep.subr.mxu0 0.0
    %190 = vmatpush1.msra.mxu0 0.0
    %191 = vmatprep.subr.mxu0 0.0
    %192 = vmatpush1.msra.mxu0 0.0
    %193 = vmatprep.subr.mxu0 0.0
    %194 = vmatpush1.msra.mxu0 0.0
    %195 = vmatprep.subr.mxu0 0.0
    %196 = vmatpush1.msra.mxu0 0.0
    %197 = vmatprep.subr.mxu0 0.0
    %198 = vmatpush1.msra.mxu0 0.0
    %199 = vmatprep.subr.mxu0 0.0
    %200 = vmatpush1.msra.mxu0 0.0
    %201 = vmatprep.mubr.f32.mxu0 0.0
    %202 = vmatmul.mubr.f32.gmra.mrb[0].mxu0 %v111
    %v203 = vpop.f32.mrb[0].mxu0
    %v204 = vadd.f32 %v135, %v203
    %v205 = vpop.f32.mrb[0].mxu0
    %206 = vdwg.mxu0
    %v207 = vmax.f32 %v204, 0.0
    %s208 = scalar_lea.vmem [#allocation2], 256
    %v209 = vld [vmem:[%s208] sm:$0xff]
    %v210 = vld [vmem:[%s208 + $0x8] sm:$0xff]
    %v211 = vld [vmem:[%s208 + $0x10] sm:$0xff]
    %v212 = vld [vmem:[%s208 + $0x18] sm:$0xff]
    %v213 = vld [vmem:[%s208 + $0x20] sm:$0xff]
    %v214 = vld [vmem:[%s208 + $0x28] sm:$0xff]
    %v215 = vld [vmem:[%s208 + $0x30] sm:$0xff]
    %v216 = vld [vmem:[%s208 + $0x38] sm:$0xff]
    %v217 = vld [vmem:[%s208 + $0x40] sm:$0xff]
    %v218 = vld [vmem:[%s208 + $0x48] sm:$0xff]
    %v219 = vld [vmem:[%s208 + $0x50] sm:$0xff]
    %v220 = vld [vmem:[%s208 + $0x58] sm:$0xff]
    %v221 = vld [vmem:[%s208 + $0x60] sm:$0xff]
    %v222 = vld [vmem:[%s208 + $0x68] sm:$0xff]
    %v223 = vld [vmem:[%s208 + $0x70] sm:$0xff]
    %v224 = vld [vmem:[%s208 + $0x78] sm:$0xff]
    %s225 = scalar_lea.vmem %s2, 2
    %v226 = vld [vmem:[%s225] sm:$0x1]
    %v228 = vlaneseq
    %v229 = vshrl.u32 %v228, 7
    %v230 = vsub.s32 0, %v229
    %v231 = vrot.slane %v226, %v230
    %233 = vmatprep.subr.mxu0 0.0
    %234 = vmatpush1.msra.mxu0 %v209
    %235 = vmatprep.subr.mxu0 0.0
    %236 = vmatpush1.msra.mxu0 %v210
    %237 = vmatprep.subr.mxu0 0.0
    %238 = vmatpush1.msra.mxu0 %v211
    %239 = vmatprep.subr.mxu0 0.0
    %240 = vmatpush1.msra.mxu0 %v212
    %241 = vmatprep.subr.mxu0 0.0
    %242 = vmatpush1.msra.mxu0 %v213
    %243 = vmatprep.subr.mxu0 0.0
    %244 = vmatpush1.msra.mxu0 %v214
    %245 = vmatprep.subr.mxu0 0.0
    %246 = vmatpush1.msra.mxu0 %v215
    %247 = vmatprep.subr.mxu0 0.0
    %248 = vmatpush1.msra.mxu0 %v216
    %249 = vmatprep.subr.mxu0 0.0
    %250 = vmatpush1.msra.mxu0 %v217
    %251 = vmatprep.subr.mxu0 0.0
    %252 = vmatpush1.msra.mxu0 %v218
    %253 = vmatprep.subr.mxu0 0.0
    %254 = vmatpush1.msra.mxu0 %v219
    %255 = vmatprep.subr.mxu0 0.0
    %256 = vmatpush1.msra.mxu0 %v220
    %257 = vmatprep.subr.mxu0 0.0
    %258 = vmatpush1.msra.mxu0 %v221
    %259 = vmatprep.subr.mxu0 0.0
    %260 = vmatpush1.msra.mxu0 %v222
    %261 = vmatprep.subr.mxu0 0.0
    %262 = vmatpush1.msra.mxu0 %v223
    %263 = vmatprep.subr.mxu0 0.0
    %264 = vmatpush1.msra.mxu0 %v224
    %265 = vmatprep.subr.mxu0 0.0
    %266 = vmatpush1.msra.mxu0 0.0
    %267 = vmatprep.subr.mxu0 0.0
    %268 = vmatpush1.msra.mxu0 0.0
    %269 = vmatprep.subr.mxu0 0.0
    %270 = vmatpush1.msra.mxu0 0.0
    %271 = vmatprep.subr.mxu0 0.0
    %272 = vmatpush1.msra.mxu0 0.0
    %273 = vmatprep.subr.mxu0 0.0
    %274 = vmatpush1.msra.mxu0 0.0
    %275 = vmatprep.subr.mxu0 0.0
    %276 = vmatpush1.msra.mxu0 0.0
    %277 = vmatprep.subr.mxu0 0.0
    %278 = vmatpush1.msra.mxu0 0.0
    %279 = vmatprep.subr.mxu0 0.0
    %280 = vmatpush1.msra.mxu0 0.0
    %281 = vmatprep.subr.mxu0 0.0
    %282 = vmatpush1.msra.mxu0 0.0
    %283 = vmatprep.subr.mxu0 0.0
    %284 = vmatpush1.msra.mxu0 0.0
    %285 = vmatprep.subr.mxu0 0.0
    %286 = vmatpush1.msra.mxu0 0.0
    %287 = vmatprep.subr.mxu0 0.0
    %288 = vmatpush1.msra.mxu0 0.0
    %289 = vmatprep.subr.mxu0 0.0
    %290 = vmatpush1.msra.mxu0 0.0
    %291 = vmatprep.subr.mxu0 0.0
    %292 = vmatpush1.msra.mxu0 0.0
    %293 = vmatprep.subr.mxu0 0.0
    %294 = vmatpush1.msra.mxu0 0.0
    %295 = vmatprep.subr.mxu0 0.0
    %296 = vmatpush1.msra.mxu0 0.0
    %297 = vmatprep.mubr.f32.mxu0 0.0
    %298 = vmatmul.mubr.f32.gmra.mrb[0].mxu0 %v207
    %v299 = vpop.f32.mrb[0].mxu0
    %v300 = vadd.f32 %v231, %v299
    %v301 = vpop.f32.mrb[0].mxu0
    %302 = vdwg.mxu0
    %v303 = vmax.f32 %v300, 0.0
    %s304 = scalar_lea.vmem [#allocation2], 384
    %v305 = vld [vmem:[%s304] sm:$0xff]
    %v306 = vld [vmem:[%s304 + $0x8] sm:$0xff]
    %v307 = vld [vmem:[%s304 + $0x10] sm:$0xff]
    %v308 = vld [vmem:[%s304 + $0x18] sm:$0xff]
    %v309 = vld [vmem:[%s304 + $0x20] sm:$0xff]
    %v310 = vld [vmem:[%s304 + $0x28] sm:$0xff]
    %v311 = vld [vmem:[%s304 + $0x30] sm:$0xff]
    %v312 = vld [vmem:[%s304 + $0x38] sm:$0xff]
    %v313 = vld [vmem:[%s304 + $0x40] sm:$0xff]
    %v314 = vld [vmem:[%s304 + $0x48] sm:$0xff]
    %v315 = vld [vmem:[%s304 + $0x50] sm:$0xff]
    %v316 = vld [vmem:[%s304 + $0x58] sm:$0xff]
    %v317 = vld [vmem:[%s304 + $0x60] sm:$0xff]
    %v318 = vld [vmem:[%s304 + $0x68] sm:$0xff]
    %v319 = vld [vmem:[%s304 + $0x70] sm:$0xff]
    %v320 = vld [vmem:[%s304 + $0x78] sm:$0xff]
    %s321 = scalar_lea.vmem %s2, 3
    %v322 = vld [vmem:[%s321] sm:$0x1]
    %v324 = vlaneseq
    %v325 = vshrl.u32 %v324, 7
    %v326 = vsub.s32 0, %v325
    %v327 = vrot.slane %v322, %v326
    %329 = vmatprep.subr.mxu0 0.0
    %330 = vmatpush1.msra.mxu0 %v305
    %331 = vmatprep.subr.mxu0 0.0
    %332 = vmatpush1.msra.mxu0 %v306
    %333 = vmatprep.subr.mxu0 0.0
    %334 = vmatpush1.msra.mxu0 %v307
    %335 = vmatprep.subr.mxu0 0.0
    %336 = vmatpush1.msra.mxu0 %v308
    %337 = vmatprep.subr.mxu0 0.0
    %338 = vmatpush1.msra.mxu0 %v309
    %339 = vmatprep.subr.mxu0 0.0
    %340 = vmatpush1.msra.mxu0 %v310
    %341 = vmatprep.subr.mxu0 0.0
    %342 = vmatpush1.msra.mxu0 %v311
    %343 = vmatprep.subr.mxu0 0.0
    %344 = vmatpush1.msra.mxu0 %v312
    %345 = vmatprep.subr.mxu0 0.0
    %346 = vmatpush1.msra.mxu0 %v313
    %347 = vmatprep.subr.mxu0 0.0
    %348 = vmatpush1.msra.mxu0 %v314
    %349 = vmatprep.subr.mxu0 0.0
    %350 = vmatpush1.msra.mxu0 %v315
    %351 = vmatprep.subr.mxu0 0.0
    %352 = vmatpush1.msra.mxu0 %v316
    %353 = vmatprep.subr.mxu0 0.0
    %354 = vmatpush1.msra.mxu0 %v317
    %355 = vmatprep.subr.mxu0 0.0
    %356 = vmatpush1.msra.mxu0 %v318
    %357 = vmatprep.subr.mxu0 0.0
    %358 = vmatpush1.msra.mxu0 %v319
    %359 = vmatprep.subr.mxu0 0.0
    %360 = vmatpush1.msra.mxu0 %v320
    %361 = vmatprep.subr.mxu0 0.0
    %362 = vmatpush1.msra.mxu0 0.0
    %363 = vmatprep.subr.mxu0 0.0
    %364 = vmatpush1.msra.mxu0 0.0
    %365 = vmatprep.subr.mxu0 0.0
    %366 = vmatpush1.msra.mxu0 0.0
    %367 = vmatprep.subr.mxu0 0.0
    %368 = vmatpush1.msra.mxu0 0.0
    %369 = vmatprep.subr.mxu0 0.0
    %370 = vmatpush1.msra.mxu0 0.0
    %371 = vmatprep.subr.mxu0 0.0
    %372 = vmatpush1.msra.mxu0 0.0
    %373 = vmatprep.subr.mxu0 0.0
    %374 = vmatpush1.msra.mxu0 0.0
    %375 = vmatprep.subr.mxu0 0.0
    %376 = vmatpush1.msra.mxu0 0.0
    %377 = vmatprep.subr.mxu0 0.0
    %378 = vmatpush1.msra.mxu0 0.0
    %379 = vmatprep.subr.mxu0 0.0
    %380 = vmatpush1.msra.mxu0 0.0
    %381 = vmatprep.subr.mxu0 0.0
    %382 = vmatpush1.msra.mxu0 0.0
    %383 = vmatprep.subr.mxu0 0.0
    %384 = vmatpush1.msra.mxu0 0.0
    %385 = vmatprep.subr.mxu0 0.0
    %386 = vmatpush1.msra.mxu0 0.0
    %387 = vmatprep.subr.mxu0 0.0
    %388 = vmatpush1.msra.mxu0 0.0
    %389 = vmatprep.subr.mxu0 0.0
    %390 = vmatpush1.msra.mxu0 0.0
    %391 = vmatprep.subr.mxu0 0.0
    %392 = vmatpush1.msra.mxu0 0.0
    %393 = vmatprep.mubr.f32.mxu0 0.0
    %394 = vmatmul.mubr.f32.gmra.mrb[0].mxu0 %v303
    %v395 = vpop.f32.mrb[0].mxu0
    %v396 = vadd.f32 %v327, %v395
    %v397 = vpop.f32.mrb[0].mxu0
    %398 = vdwg.mxu0
    %vm399 = vcmask 31744
    %400 = vst.msk [vmem:[%s3] sm:$0xff] %vm399, %v396
    // Predicated region
    $region18: #{_dnn_forward.1} parent=1 // pred_check
      _
    $region19: #{_dnn_forward.1} parent=1 // pred_check_branch
      %402 = sbr.rel (0) target = $region21
    $region20: #{_dnn_forward.1} parent=1 // pred_region
      _
    $region21: #{_dnn_forward.1} parent=1 // pred_fallthru
      _
    // Predicated region
    $region22: #{_dnn_forward.1} parent=1 // pred_check
      _
    $region23: #{_dnn_forward.1} parent=1 // pred_check_branch
      %404 = sbr.rel (0) target = $region25
    $region24: #{_dnn_forward.1} parent=1 // pred_region
      _
    $region25: #{_dnn_forward.1} parent=1 // pred_fallthru
      _
    %405 = vsyncpa [#allocation3], 1

</llo_original>
